<compile_context>
chip_gen: v7x
topology: tpu7x:2x2x1
jax: 0.10.0
libtpu: 0.0.40
codegen_flags: <defaults>
</compile_context>

<pallas_src>
import functools

import jax
import jax.numpy as jnp
from jax.experimental import pallas as pl
from jax.experimental.pallas import tpu as pltpu

IGNORE_INDEX = -100


def _round_up(x, m):
    return ((x + m - 1) // m) * m


def _ce_kernel(logits_ref, labels_ref, out_ref, acc_ref):
    """One (1, TM, V) tile of the original logits for batch b, row-tile t.

    Rows whose (shifted, padded) label == IGNORE_INDEX contribute 0; this also
    masks rows past S-1 (including any out-of-bounds padding of the last tile).
    Per-token losses accumulate into acc_ref (TM,1) across the t axis; the
    scalar reduce + store to the per-batch (1,1,1) output happens on the last t.
    """
    t = pl.program_id(1)

    @pl.when(t == 0)
    def _():
        acc_ref[...] = jnp.zeros_like(acc_ref)

    x = logits_ref[0].astype(jnp.float32)          # (TM, V)  cast in-kernel
    lab = labels_ref[0]                            # (TM, 1)  int32

    # numerically stable log-sum-exp over vocab
    m = jnp.max(x, axis=-1, keepdims=True)                                   # (TM, 1)
    lse = m + jnp.log(jnp.sum(jnp.exp(x - m), axis=-1, keepdims=True))       # (TM, 1)

    # gather target logit via one-hot compare (no dynamic gather on TPU)
    iota = jax.lax.broadcasted_iota(jnp.int32, x.shape, 1)                   # (TM, V)
    tgt = jnp.sum(jnp.where(iota == lab, x, jnp.float32(0.0)),
                  axis=-1, keepdims=True)                                    # (TM, 1)

    valid = lab != IGNORE_INDEX                                              # (TM, 1)
    acc_ref[...] += jnp.where(valid, lse - tgt, jnp.float32(0.0))

    @pl.when(t == pl.num_programs(1) - 1)
    def _():
        out_ref[...] = jnp.sum(acc_ref[...]).reshape(1, 1, 1)


@functools.partial(jax.jit, static_argnames=("tile_rows",))
def gpt_lm_loss(logits, labels, tile_rows=128):
    """logits: (B, S, V) float (f32/bf16); labels: (B, S) int. Scalar f32 loss."""
    B, S, V = logits.shape
    n_rows = S - 1                                  # number of shifted tokens per batch

    # ---- tiny label-side prep (the big logits tensor is passed through untouched) ----
    shift_labels = labels[:, 1:].astype(jnp.int32)  # (B, S-1)
    n_valid = jnp.sum((shift_labels != IGNORE_INDEX).astype(jnp.float32))

    # ---- choose row-tile size: multiple of 8, sized to dtype / vocab / VMEM ----
    itemsize = jnp.dtype(logits.dtype).itemsize
    tm = max(8, (int(tile_rows) // 8) * 8)
    tm = min(tm, _round_up(n_rows, 8))
    max_tile_bytes = 20 << 20                       # per logits buffer (v7x: 64 MiB VMEM)
    while tm > 8 and tm * V * itemsize > max_tile_bytes:
        tm = max(8, ((tm // 2) // 8) * 8)

    num_t = -(-n_rows // tm)                        # cdiv
    L = num_t * tm
    pad = L - n_rows
    lab_padded = jnp.pad(shift_labels, ((0, 0), (0, pad)),
                         constant_values=IGNORE_INDEX)
    labels_3d = lab_padded.reshape(B, L, 1)

    vmem_limit = int(2 * tm * V * itemsize          # double-buffered logits tiles
                     + 2 * tm * 4                   # double-buffered label tiles
                     + tm * 4                       # accumulator scratch
                     + (4 << 20))                   # headroom
    vmem_limit = max(vmem_limit, 32 << 20)

    partial_sums = pl.pallas_call(
        _ce_kernel,
        out_shape=jax.ShapeDtypeStruct((B, 1, 1), jnp.float32),
        grid_spec=pltpu.PrefetchScalarGridSpec(
            num_scalar_prefetch=0,
            grid=(B, num_t),
            in_specs=[
                # shift via index_map on the ORIGINAL logits: tile t covers
                # original rows [t*tm, t*tm+tm); rows >= S-1 are masked by labels.
                pl.BlockSpec((1, tm, V), lambda b, t: (b, t, 0)),
                pl.BlockSpec((1, tm, 1), lambda b, t: (b, t, 0)),
            ],
            out_specs=pl.BlockSpec((1, 1, 1), lambda b, t: (b, 0, 0)),
            scratch_shapes=[pltpu.VMEM((tm, 1), jnp.float32)],
        ),
        compiler_params=pltpu.CompilerParams(
            dimension_semantics=("parallel", "arbitrary"),
            vmem_limit_bytes=vmem_limit,
        ),
    )(logits, labels_3d)

    return (jnp.sum(partial_sums) / n_valid).astype(jnp.float32)


def _reference_loss(logits, labels):
    """Pure-JAX reference matching torch.nn.CrossEntropyLoss(ignore_index=-100)."""
    B, S, V = logits.shape
    x = logits[:, :-1, :].reshape(-1, V).astype(jnp.float32)
    y = labels[:, 1:].reshape(-1)
    lse = jax.nn.logsumexp(x, axis=-1)
    safe_y = jnp.where(y == IGNORE_INDEX, 0, y)
    tgt = jnp.take_along_axis(x, safe_y[:, None], axis=-1)[:, 0]
    valid = y != IGNORE_INDEX
    per = jnp.where(valid, lse - tgt, 0.0)
    return jnp.sum(per) / jnp.sum(valid.astype(jnp.float32))


if __name__ == "__main__":
    key = jax.random.PRNGKey(0)
    k1, k2, k3, k4 = jax.random.split(key, 4)

    # Test 1: f32 logits, single row-tile per batch, some ignored positions.
    B, S, V = 2, 8, 128
    logits = jax.random.normal(k1, (B, S, V), dtype=jnp.float32)
    labels = jax.random.randint(k2, (B, S), 0, V, dtype=jnp.int32)
    ignore_mask = jax.random.bernoulli(k3, 0.2, (B, S))
    labels = jnp.where(ignore_mask, IGNORE_INDEX, labels)

    loss = gpt_lm_loss(logits, labels)
    jax.block_until_ready(loss)
    ref = _reference_loss(logits, labels)
    assert jnp.allclose(loss, ref, atol=1e-5, rtol=1e-5), (loss, ref)

    # Test 2: bf16 logits kept in HBM (cast in-kernel), multi-tile grid with a
    # ragged last row tile (exercises the padded/masked path).
    B2, S2, V2 = 2, 24, 256
    logits2 = jax.random.normal(k4, (B2, S2, V2), dtype=jnp.float32).astype(jnp.bfloat16)
    labels2 = jax.random.randint(k2, (B2, S2), 0, V2, dtype=jnp.int32)
    loss2 = gpt_lm_loss(logits2, labels2, tile_rows=16)
    jax.block_until_ready(loss2)
    ref2 = _reference_loss(logits2, labels2)
    assert jnp.allclose(loss2, ref2, atol=1e-4, rtol=1e-4), (loss2, ref2)

    print("KERNEL_OK")
</pallas_src>

<mosaic_0001>
module attributes {stable_mosaic.version = 11 : i64} {
  func.func @_ce_kernel(%arg0: i32, %arg1: i32, %arg2: memref<1x8x128xf32, #tpu.memory_space<vmem>>, %arg3: memref<1x8x1xi32, #tpu.memory_space<vmem>>, %arg4: memref<1x1x1xf32, #tpu.memory_space<vmem>>, %arg5: memref<8x1xf32, #tpu.memory_space<vmem>>) attributes {dimension_semantics = [#tpu.dimension_semantics<parallel>, #tpu.dimension_semantics<arbitrary>], iteration_bounds = array<i64: 2, 1>, scalar_prefetch = 0 : i64, scratch_operands = 1 : i64, tpu.core_type = #tpu.core_type<tc>, window_params = [{transform_indices = @transform_0, window_bounds = array<i64: 1, 8, 128>}, {transform_indices = @transform_1, window_bounds = array<i64: 1, 8, 1>}, {transform_indices = @transform_2, window_bounds = array<i64: 1, 1, 1>}]} {
    %c0_i32 = arith.constant 0 : i32
    %0 = arith.cmpi eq, %arg1, %c0_i32 : i32
    %1 = arith.extui %0 : i1 to i32
    %c0_i32_0 = arith.constant 0 : i32
    %2 = arith.cmpi ne, %1, %c0_i32_0 : i32
    scf.if %2 {
      %cst_16 = arith.constant 0.000000e+00 : f32
      %34 = vector.broadcast %cst_16 : f32 to vector<8x1xf32>
      %c0_17 = arith.constant 0 : index
      %c0_18 = arith.constant 0 : index
      %35 = vector.load %arg5[%c0_17, %c0_18] : memref<8x1xf32, #tpu.memory_space<vmem>>, vector<8x1xf32>
      tpu.vector_store %arg5[%c0_17, %c0_18], %34 {strides = array<i32>} : memref<8x1xf32, #tpu.memory_space<vmem>>, vector<8x1xf32>,
    } else {
    }
    %c0 = arith.constant 0 : index
    %c0_1 = arith.constant 0 : index
    %c0_2 = arith.constant 0 : index
    %3 = vector.load %arg2[%c0, %c0_1, %c0_2] : memref<1x8x128xf32, #tpu.memory_space<vmem>>, vector<1x8x128xf32>
    %4 = vector.shape_cast %3 : vector<1x8x128xf32> to vector<8x128xf32>
    %c0_3 = arith.constant 0 : index
    %c0_4 = arith.constant 0 : index
    %c0_5 = arith.constant 0 : index
    %5 = vector.load %arg3[%c0_3, %c0_4, %c0_5] : memref<1x8x1xi32, #tpu.memory_space<vmem>>, vector<1x8x1xi32>
    %6 = vector.shape_cast %5 : vector<1x8x1xi32> to vector<8x1xi32>
    %cst = arith.constant dense<0xFF800000> : vector<8xf32>
    %7 = vector.multi_reduction <maximumf>, %4, %cst [1] : vector<8x128xf32> to vector<8xf32>
    %8 = vector.shape_cast %7 : vector<8xf32> to vector<8x1xf32>
    %9 = vector.broadcast %8 : vector<8x1xf32> to vector<8x128xf32>
    %10 = arith.subf %4, %9 : vector<8x128xf32>
    %11 = math.exp %10 : vector<8x128xf32>
    %cst_6 = arith.constant dense<0.000000e+00> : vector<8xf32>
    %12 = vector.multi_reduction <add>, %11, %cst_6 [1] : vector<8x128xf32> to vector<8xf32>
    %13 = vector.shape_cast %12 : vector<8xf32> to vector<8x1xf32>
    %14 = math.log %13 : vector<8x1xf32>
    %15 = arith.addf %8, %14 : vector<8x1xf32>
    %16 = tpu.iota {dimensions = array<i32: 1>} : vector<8x128xi32>
    %17 = vector.broadcast %6 : vector<8x1xi32> to vector<8x128xi32>
    %18 = arith.cmpi eq, %16, %17 : vector<8x128xi32>
    %cst_7 = arith.constant 0.000000e+00 : f32
    %19 = vector.broadcast %cst_7 : f32 to vector<8x128xf32>
    %20 = arith.select %18, %4, %19 : vector<8x128xi1>, vector<8x128xf32>
    %cst_8 = arith.constant dense<0.000000e+00> : vector<8xf32>
    %21 = vector.multi_reduction <add>, %20, %cst_8 [1] : vector<8x128xf32> to vector<8xf32>
    %22 = vector.shape_cast %21 : vector<8xf32> to vector<8x1xf32>
    %c-100_i32 = arith.constant -100 : i32
    %23 = vector.broadcast %c-100_i32 : i32 to vector<8x1xi32>
    %24 = arith.cmpi ne, %6, %23 : vector<8x1xi32>
    %c0_9 = arith.constant 0 : index
    %c0_10 = arith.constant 0 : index
    %25 = vector.load %arg5[%c0_9, %c0_10] : memref<8x1xf32, #tpu.memory_space<vmem>>, vector<8x1xf32>
    %26 = arith.subf %15, %22 : vector<8x1xf32>
    %cst_11 = arith.constant 0.000000e+00 : f32
    %27 = vector.broadcast %cst_11 : f32 to vector<8x1xf32>
    %28 = arith.select %24, %26, %27 : vector<8x1xi1>, vector<8x1xf32>
    %29 = arith.addf %25, %28 : vector<8x1xf32>
    %c0_12 = arith.constant 0 : index
    %c0_13 = arith.constant 0 : index
    %30 = vector.load %arg5[%c0_12, %c0_13] : memref<8x1xf32, #tpu.memory_space<vmem>>, vector<8x1xf32>
    tpu.vector_store %arg5[%c0_12, %c0_13], %29 {strides = array<i32>} : memref<8x1xf32, #tpu.memory_space<vmem>>, vector<8x1xf32>,
    %c0_i32_14 = arith.constant 0 : i32
    %31 = arith.cmpi eq, %arg1, %c0_i32_14 : i32
    %32 = arith.extui %31 : i1 to i32
    %c0_i32_15 = arith.constant 0 : i32
    %33 = arith.cmpi ne, %32, %c0_i32_15 : i32
    scf.if %33 {
      %c0_16 = arith.constant 0 : index
      %c0_17 = arith.constant 0 : index
      %34 = vector.load %arg5[%c0_16, %c0_17] : memref<8x1xf32, #tpu.memory_space<vmem>>, vector<8x1xf32>
      %35 = vector.shape_cast %34 : vector<8x1xf32> to vector<1x8x1xf32>
      %cst_18 = arith.constant dense<0.000000e+00> : vector<1xf32>
      %36 = vector.multi_reduction <add>, %35, %cst_18 [1, 2] : vector<1x8x1xf32> to vector<1xf32>
      %37 = vector.shape_cast %36 : vector<1xf32> to vector<1x1x1xf32>
      %38 = vector.extract %37[0, 0, 0] : f32 from vector<1x1x1xf32>
      %39 = vector.broadcast %38 : f32 to vector<1x1x1xf32>
      %c0_19 = arith.constant 0 : index
      %c0_20 = arith.constant 0 : index
      %c0_21 = arith.constant 0 : index
      %40 = vector.load %arg4[%c0_19, %c0_20, %c0_21] : memref<1x1x1xf32, #tpu.memory_space<vmem>>, vector<1x1x1xf32>
      tpu.vector_store %arg4[%c0_19, %c0_20, %c0_21], %39 {strides = array<i32>} : memref<1x1x1xf32, #tpu.memory_space<vmem>>, vector<1x1x1xf32>,
    } else {
    }
    return
  }
  func.func @transform_0(%arg0: i32, %arg1: i32) -> (i32, i32, i32) {
    %c0_i32 = arith.constant 0 : i32
    %c0_i32_0 = arith.constant 0 : i32
    return %arg0, %arg1, %c0_i32 : i32, i32, i32
  }
  func.func @transform_1(%arg0: i32, %arg1: i32) -> (i32, i32, i32) {
    %c0_i32 = arith.constant 0 : i32
    %c0_i32_0 = arith.constant 0 : i32
    return %arg0, %arg1, %c0_i32 : i32, i32, i32
  }
  func.func @transform_2(%arg0: i32, %arg1: i32) -> (i32, i32, i32) {
    %c0_i32 = arith.constant 0 : i32
    %c0_i32_0 = arith.constant 0 : i32
    %c0_i32_1 = arith.constant 0 : i32
    return %arg0, %c0_i32, %c0_i32_0 : i32, i32, i32
  }
}

</mosaic_0001>

<llo_original>
// kernel: gpt_lm_loss.1
$region0: #{gpt_lm_loss.1}
  #allocation0 [shape = 'u32[]', space=smem, size = 0x4, offset = 0x4, fixed_abs, tag = 'smem constant byte address 0x4 - core index']
  #allocation1 [shape = 'u32[144,128]{1,0:T(1,128)}', space=vmem, size = 0x12000, scoped, tag = 'internal scratch']
  #allocation2 [shape = 'f32[8,1]{1,0:T(8,128)}', space=vmem, size = 0x1000, scoped, tag = 'scratch operand']
  %s0 = inlined_call_operand.vmem [shape: f32[2,8,128], index: 0, kind: input, shape index: {}]
  %s1 = inlined_call_operand.vmem [shape: s32[2,8,1], index: 1, kind: input, shape index: {}]
  %s2 = inlined_call_operand.vmem [shape: f32[2,1,1], index: 2, kind: output, shape index: {}]
  %s3 = sld [smem:[#allocation0]]
  $region49: #{gpt_lm_loss.1} parent=0
    _
  %s5 = ssub.s32 1, %s3
  %s6 = scalar_select 0, %s5, %s3
  loop: start=0, step=1, limit=4
  $region2: #{gpt_lm_loss.1} parent=0 // loop_pre_header
    _
  $region3: #{gpt_lm_loss.1} parent=0 // loop_header
    %s8 = sphi 0, %s12
    %p9 = scmp.ge.s32.totalorder %s8, 4
    %s15 = sphi 0, %s27
    %s16 = sphi 0, %s23
    %s17 = sphi 0, %s15
    %s18 = sphi 0, %s16
    %s19 = sphi 0, %s17
    %s20 = sphi 0, %s18
    %s32 = sphi 0, %s34
    %s35 = sphi 0, %s32
    %s36 = sphi 0, %s35
    %s52 = sphi 0, %s36
    %s60 = sphi 0, %s62
    %s63 = sphi 0, %s60
    %s64 = sphi 0, %s63
    %s80 = sphi 0, %s64
    %s86 = sphi 0, %s88
    %s89 = sphi 0, %s86
    %s90 = sphi 0, %s89
    %s106 = sphi 0, %s90
  $region4: #{gpt_lm_loss.1} parent=0 // loop_header_branch
    %11 = sbr.rel (%p9) target = $region8
  $region5: #{gpt_lm_loss.1} parent=0 // loop_body
    %s13 = ssub.s32 %s8, 1
    %s14 = ssub.s32 %s8, 2
    %s21 = sadd.s32 1, %s16
    %p22 = scmp.ge.s32.totalorder %s21, 1
    %s23 = scalar_select %p22, 0, %s21
    %s24 = sadd.s32 1, %s15
    %s25 = scalar_select %p22, %s24, %s15
    %p26 = scmp.ge.s32.totalorder %s25, 2
    %s27 = scalar_select %p26, 0, %s25
    %s28 = ssub.s32 %s15, %s27
    %s29 = ssub.s32 %s16, %s23
    %s30 = sor.u32 %s28, %s29
    %p31 = scmp.eq.s32.totalorder %s30, 0
    %s33 = sadd.s32 %s32, 1
    %s34 = scalar_select %p31, %s32, %s33
    %p37 = pneg %p31
    %p38 = scmp.eq.s32.totalorder %s8, 1
    %p39 = por %p37, %p38
    %p40 = scmp.ne.s32.totalorder %s32, %s35
    %p41 = scmp.eq.s32.totalorder %s8, 0
    %p42 = por %p40, %p41
    %p43 = scmp.ne.s32.totalorder %s32, %s35
    %p44 = scmp.eq.s32.totalorder %s13, 1
    %p45 = por %p43, %p44
    %p46 = scmp.ne.s32.totalorder %s35, %s36
    %p47 = scmp.eq.s32.totalorder %s13, 0
    %p48 = por %p46, %p47
    %p49 = scmp.ne.s32.totalorder %s35, %s36
    %p50 = scmp.eq.s32.totalorder %s14, 1
    %p51 = por %p49, %p50
    %p53 = scmp.ne.s32.totalorder %s36, %s52
    %p54 = scmp.eq.s32.totalorder %s14, 0
    %p55 = por %p53, %p54
    %s56 = ssub.s32 %s15, %s27
    %s57 = ssub.s32 %s16, %s23
    %s58 = sor.u32 %s56, %s57
    %p59 = scmp.eq.s32.totalorder %s58, 0
    %s61 = sadd.s32 %s60, 1
    %s62 = scalar_select %p59, %s60, %s61
    %p65 = pneg %p59
    %p66 = scmp.eq.s32.totalorder %s8, 1
    %p67 = por %p65, %p66
    %p68 = scmp.ne.s32.totalorder %s60, %s63
    %p69 = scmp.eq.s32.totalorder %s8, 0
    %p70 = por %p68, %p69
    %p71 = scmp.ne.s32.totalorder %s60, %s63
    %p72 = scmp.eq.s32.totalorder %s13, 1
    %p73 = por %p71, %p72
    %p74 = scmp.ne.s32.totalorder %s63, %s64
    %p75 = scmp.eq.s32.totalorder %s13, 0
    %p76 = por %p74, %p75
    %p77 = scmp.ne.s32.totalorder %s63, %s64
    %p78 = scmp.eq.s32.totalorder %s14, 1
    %p79 = por %p77, %p78
    %p81 = scmp.ne.s32.totalorder %s64, %s80
    %p82 = scmp.eq.s32.totalorder %s14, 0
    %p83 = por %p81, %p82
    %s84 = ssub.s32 %s15, %s27
    %p85 = scmp.eq.s32.totalorder %s84, 0
    %s87 = sadd.s32 %s86, 1
    %s88 = scalar_select %p85, %s86, %s87
    %p91 = pneg %p85
    %p92 = scmp.eq.s32.totalorder %s8, 1
    %p93 = por %p91, %p92
    %p94 = scmp.ne.s32.totalorder %s86, %s89
    %p95 = scmp.eq.s32.totalorder %s8, 0
    %p96 = por %p94, %p95
    %p97 = scmp.ne.s32.totalorder %s86, %s89
    %p98 = scmp.eq.s32.totalorder %s13, 1
    %p99 = por %p97, %p98
    %p100 = scmp.ne.s32.totalorder %s89, %s90
    %p101 = scmp.eq.s32.totalorder %s13, 0
    %p102 = por %p100, %p101
    %p103 = scmp.ne.s32.totalorder %s89, %s90
    %p104 = scmp.eq.s32.totalorder %s14, 1
    %p105 = por %p103, %p104
    %p107 = scmp.ne.s32.totalorder %s90, %s106
    %p108 = scmp.eq.s32.totalorder %s14, 0
    %p109 = por %p107, %p108
    %p110 = scmp.le.s32.totalorder 1, %s8
    %p111 = scmp.lt.s32.totalorder %s8, 3
    %p112 = pnand %p110, %p111
    %p113 = pneg %p112
    // Predicated region
    $region9: #{gpt_lm_loss.1} parent=5 // pred_check
      _
    $region10: #{gpt_lm_loss.1} parent=5 // pred_check_branch
      %115 = sbr.rel (%p112) target = $region12
    $region11: #{gpt_lm_loss.1} parent=5 // pred_region
      %s116 = ssub.s32 %s8, 1
    $region12: #{gpt_lm_loss.1} parent=5 // pred_fallthru
      _
    %p117 = scmp.lt.s32.totalorder %s8, 2
    // Predicated region
    $region13: #{gpt_lm_loss.1} parent=5 // pred_check
      %p118 = pneg %p117
    $region14: #{gpt_lm_loss.1} parent=5 // pred_check_branch
      %120 = sbr.rel (%p118) target = $region16
    $region15: #{gpt_lm_loss.1} parent=5 // pred_region
      // Predicated region
      $region17: #{gpt_lm_loss.1} parent=15 // pred_check
        %p121 = pneg %p42
      $region18: #{gpt_lm_loss.1} parent=15 // pred_check_branch
        %123 = sbr.rel (%p121) target = $region20
      $region19: #{gpt_lm_loss.1} parent=15 // pred_region
        %p124 = scmp.lt.s32.totalorder %s15, 1
        %s125 = scalar_select %p124, %s15, 1
        %p126 = scmp.lt.s32.totalorder %s16, 0
        %s127 = scalar_select %p126, %s16, 0
        %s128 = sadd.s32 %s127, %s125
        %s129 = smul.addr %s128, 8
        %s130 = scalar_lea.vmem %s0, %s129
      $region20: #{gpt_lm_loss.1} parent=15 // pred_fallthru
        _
      // Predicated region
      $region21: #{gpt_lm_loss.1} parent=15 // pred_check
        %p131 = pneg %p70
      $region22: #{gpt_lm_loss.1} parent=15 // pred_check_branch
        %133 = sbr.rel (%p131) target = $region24
      $region23: #{gpt_lm_loss.1} parent=15 // pred_region
        %p134 = scmp.lt.s32.totalorder %s15, 1
        %s135 = scalar_select %p134, %s15, 1
        %p136 = scmp.lt.s32.totalorder %s16, 0
        %s137 = scalar_select %p136, %s16, 0
        %s138 = sadd.s32 %s137, %s135
        %s139 = smul.addr %s138, 8
        %s140 = scalar_lea.vmem %s1, %s139
      $region24: #{gpt_lm_loss.1} parent=15 // pred_fallthru
        _
    $region16: #{gpt_lm_loss.1} parent=5 // pred_fallthru
      _
    %p141 = scmp.le.s32.totalorder 1, %s8
    %p142 = scmp.lt.s32.totalorder %s8, 3
    %p143 = pnand %p141, %p142
    %p144 = pneg %p143
    // Predicated region
    $region25: #{gpt_lm_loss.1} parent=5 // pred_check
      _
    $region26: #{gpt_lm_loss.1} parent=5 // pred_check_branch
      %146 = sbr.rel (%p143) target = $region28
    $region27: #{gpt_lm_loss.1} parent=5 // pred_region
      %s147 = ssub.s32 %s8, 1
      %p148 = scmp.lt.s32.totalorder %s17, 1
      %s149 = scalar_select %p148, %s17, 1
      %p150 = scmp.lt.s32.totalorder %s18, 0
      %s151 = scalar_select %p150, %s18, 0
      %s152 = sadd.s32 %s151, %s149
      %s153 = smul.addr %s152, 8
      %s154 = scalar_lea.vmem %s0, %s153
      %p155 = pneg %p48
      %p156 = pneg %p45
      %p157 = scmp.lt.s32.totalorder %s17, 1
      %s158 = scalar_select %p157, %s17, 1
      %p159 = scmp.lt.s32.totalorder %s18, 0
      %s160 = scalar_select %p159, %s18, 0
      %s161 = sadd.s32 %s160, %s158
      %s162 = smul.addr %s161, 8
      %s163 = scalar_lea.vmem %s1, %s162
      %p164 = pneg %p76
      %p165 = pneg %p73
      %p166 = pneg %p102
      %p167 = pneg %p99
      %p168 = scmp.lt.s32.totalorder %s17, 1
      %s169 = scalar_select %p168, %s17, 1
      %s170 = scalar_lea.vmem %s2, %s169
      %p171 = scmp.lt.s32.totalorder %s17, 1
      %s172 = scalar_select %p171, %s17, 1
      %p173 = scmp.lt.s32.totalorder %s18, 0
      %s174 = scalar_select %p173, %s18, 0
      %s175 = sadd.s32 %s174, %s172
      %s176 = smul.addr %s175, 8
      %s177 = scalar_lea.vmem %s0, %s176
      %p178 = scmp.lt.s32.totalorder %s17, 1
      %s179 = scalar_select %p178, %s17, 1
      %p180 = scmp.lt.s32.totalorder %s18, 0
      %s181 = scalar_select %p180, %s18, 0
      %s182 = sadd.s32 %s181, %s179
      %s183 = smul.addr %s182, 8
      %s184 = scalar_lea.vmem %s1, %s183
      %p185 = scmp.lt.s32.totalorder %s17, 1
      %s186 = scalar_select %p185, %s17, 1
      %s187 = scalar_lea.vmem %s2, %s186
      %p188 = scmp.eq.s32.totalorder %s18, 0
      // Predicated region
      $region29: #{gpt_lm_loss.1} parent=27 // pred_check
        %p189 = pneg %p188
      $region30: #{gpt_lm_loss.1} parent=27 // pred_check_branch
        %191 = sbr.rel (%p189) target = $region32
      $region31: #{gpt_lm_loss.1} parent=27 // pred_region
        %vm192 = vcmask 7168
        %193 = vst.msk [vmem:[#allocation2] sm:$0xff] %vm192, 0.0
      $region32: #{gpt_lm_loss.1} parent=27 // pred_fallthru
        _
      %v194 = vld [vmem:[%s177] sm:$0xff]
      %v195 = vld [vmem:[%s184] sm:$0xff]
      %196 = vmax.xlane.f32.xlu0 %v194
      %v197 = vpop.xlane.xlu0 %196
      %v198 = vsub.f32 %v194, %v197
      %v199 = vmul.f32 %v198, 1.442695
      %v200 = vpow.pop %v199
      %201 = vadd.xlane.f32.xlu0 %v200
      %v202 = vpop.xlane.xlu0 %201
      %v203 = vlog2.pop %v202
      %v204 = vmul.f32 %v203, 0.6931472
      %v205 = vadd.f32 %v197, %v204
      %v206 = vlaneseq
      %v207 = vand.u32 %v206, 127
      %208 = vset.pattern.permute.xlu0 0
      %209 = vperm.xlu0 %208, %v195
      %v210 = vpop.permute.xlu0 %209
      %vm211 = vcmp.eq.s32.totalorder %v207, %v210
      %v212 = vsel %vm211, %v194, 0.0
      %213 = vadd.xlane.f32.xlu0 %v212
      %v214 = vpop.xlane.xlu0 %213
      %vm215 = vcmp.ne.s32.totalorder %v195, 4294967196
      %v216 = vld [vmem:[#allocation2] sm:$0xff]
      %v217 = vsub.f32 %v205, %v214
      %v218 = vsel %vm215, %v217, 0.0
      %v219 = vadd.f32 %v216, %v218
      %vm220 = vcmask 7168
      %221 = vst.msk [vmem:[#allocation2] sm:$0xff] %vm220, %v219
      // Predicated region
      $region33: #{gpt_lm_loss.1} parent=27 // pred_check
        %p222 = pneg %p188
      $region34: #{gpt_lm_loss.1} parent=27 // pred_check_branch
        %224 = sbr.rel (%p222) target = $region36
      $region35: #{gpt_lm_loss.1} parent=27 // pred_region
        %v225 = vld [vmem:[#allocation2] sm:$0xff]
        %v226 = vsel %vm220, %v225, 0.0
        %227 = vadd.xlane.f32.xlu0 %v226
        %v228 = vpop.xlane.xlu0 %227
        %v229 = vrot.slane %v228, 4
        %v230 = vadd.f32 %v228, %v229
        %v231 = vrot.slane %v230, 2
        %v232 = vadd.f32 %v230, %v231
        %v233 = vrot.slane %v232, 1
        %v234 = vadd.f32 %v232, %v233
        %s235 = vtos %v234
        %v236 = vstv %s235
        %vm237 = vcmask 0
        %238 = vst.msk [vmem:[%s187] sm:$0x1] %vm237, %v236
      $region36: #{gpt_lm_loss.1} parent=27 // pred_fallthru
        _
      %p239 = scmp.lt.s32.totalorder %s17, 1
      %s240 = scalar_select %p239, %s17, 1
      %s241 = scalar_lea.vmem %s2, %s240
      // Predicated region
      $region37: #{gpt_lm_loss.1} parent=27 // pred_check
        %p242 = pneg %p99
      $region38: #{gpt_lm_loss.1} parent=27 // pred_check_branch
        %244 = sbr.rel (%p242) target = $region40
      $region39: #{gpt_lm_loss.1} parent=27 // pred_region
        _
      $region40: #{gpt_lm_loss.1} parent=27 // pred_fallthru
        _
    $region28: #{gpt_lm_loss.1} parent=5 // pred_fallthru
      _
    %p245 = scmp.le.s32.totalorder 2, %s8
    // Predicated region
    $region41: #{gpt_lm_loss.1} parent=5 // pred_check
      %p246 = pneg %p245
    $region42: #{gpt_lm_loss.1} parent=5 // pred_check_branch
      %248 = sbr.rel (%p246) target = $region44
    $region43: #{gpt_lm_loss.1} parent=5 // pred_region
      %s249 = ssub.s32 %s8, 2
      // Predicated region
      $region45: #{gpt_lm_loss.1} parent=43 // pred_check
        %p250 = pneg %p105
      $region46: #{gpt_lm_loss.1} parent=43 // pred_check_branch
        %252 = sbr.rel (%p250) target = $region48
      $region47: #{gpt_lm_loss.1} parent=43 // pred_region
        %p253 = scmp.lt.s32.totalorder %s19, 1
        %s254 = scalar_select %p253, %s19, 1
        %s255 = scalar_lea.vmem %s2, %s254
      $region48: #{gpt_lm_loss.1} parent=43 // pred_fallthru
        _
    $region44: #{gpt_lm_loss.1} parent=5 // pred_fallthru
      _
  $region6: #{gpt_lm_loss.1} parent=0 // loop_footer
    %s12 = sadd.s32 1, %s8
  $region7: #{gpt_lm_loss.1} parent=0 // loop_footer_branch
    %7 = sbr.rel target = $region3
  $region8: #{gpt_lm_loss.1} parent=0 // loop_exit
    _

</llo_original>
